<compile_context>
chip_gen: v7x
topology: tpu7x:2x2x1
jax: 0.10.0
libtpu: 0.0.40
codegen_flags: <defaults>
</compile_context>

<pallas_src>
import jax
import jax.numpy as jnp
from jax.experimental import pallas as pl
from jax.experimental.pallas import tpu as pltpu

LANE = 128     # lane width: hidden dim padded to a multiple of this
SUBLANE = 8    # sublane width: batch tiles are multiples of this


def _round_up(n, m):
    return ((n + m - 1) // m) * m


def mlp_kernel(x_ref, w1_ref, b1_ref, w2_ref, b2_ref, w3_ref, b3_ref, o_ref):
    # fc1 + ReLU. Weights may be bf16; jnp.dot promotes them and accumulation
    # is forced to f32. Bias add + ReLU run on the VPU in f32.
    h1 = jnp.dot(x_ref[...], w1_ref[...], preferred_element_type=jnp.float32)
    h1 = jnp.maximum(h1 + b1_ref[...], 0.0)
    # fc2 + ReLU
    h2 = jnp.dot(h1, w2_ref[...], preferred_element_type=jnp.float32)
    h2 = jnp.maximum(h2 + b2_ref[...], 0.0)
    # fc3 (no activation)
    out = jnp.dot(h2, w3_ref[...], preferred_element_type=jnp.float32)
    o_ref[...] = (out + b3_ref[...]).astype(o_ref.dtype)


def init_params(key, input_dim, output_dim, num_dense):
    """Deterministic init matching the PyTorch module's shapes.

    PyTorch nn.Linear stores weight as (out, in); we keep (in, out) so the
    kernel can do x @ W directly.
    """
    k1, k2, k3, k4, k5, k6 = jax.random.split(key, 6)

    def linear(kw, kb, fan_in, fan_out):
        bound = 1.0 / jnp.sqrt(jnp.float32(fan_in))
        w = jax.random.uniform(kw, (fan_in, fan_out), jnp.float32, -bound, bound)
        b = jax.random.uniform(kb, (1, fan_out), jnp.float32, -bound, bound)
        return w, b

    w1, b1 = linear(k1, k2, input_dim, num_dense)
    w2, b2 = linear(k3, k4, num_dense, num_dense)
    w3, b3 = linear(k5, k6, num_dense, output_dim)
    return {"w1": w1, "b1": b1, "w2": w2, "b2": b2, "w3": w3, "b3": b3}


def prepare_params(params, weights_dtype=jnp.bfloat16):
    """Pad ONLY the hidden dim to a multiple of 128; cast weights to bf16.

    - input dim (din) and output dim stay at their true sizes: that is what
      keeps the kernel's HBM traffic (x read, out write) minimal.
    - zero-padding the hidden dim is semantics-preserving.
    - weights go to bf16 (native MXU input); biases stay f32 and accumulation
      is f32 inside the kernel.
    Do this ONCE and reuse the prepared params across forward calls.
    """
    def pad(a, rows, cols):
        return jnp.pad(a, ((0, rows - a.shape[0]), (0, cols - a.shape[1])))

    w1, b1 = params["w1"], params["b1"]
    w2, b2 = params["w2"], params["b2"]
    w3, b3 = params["w3"], params["b3"]
    din, h = w1.shape
    dout = w3.shape[1]
    h_p = _round_up(h, LANE)

    return {
        "w1": pad(w1, din, h_p).astype(weights_dtype),
        "b1": pad(b1, 1, h_p).astype(jnp.float32),
        "w2": pad(w2, h_p, h_p).astype(weights_dtype),
        "b2": pad(b2, 1, h_p).astype(jnp.float32),
        "w3": pad(w3, h_p, dout).astype(weights_dtype),
        "b3": b3.astype(jnp.float32),
    }


def _choose_tiling(B, tm):
    """Pick (tile_rows, grid_len). Best-effort even grid for v7x's 2 TCs."""
    if B < 2 * SUBLANE:
        # Tiny batch: one tile covering the whole batch (block dim == full
        # array dim is always legal, even when not a multiple of 8).
        return B, 1
    tm_eff = min(_round_up(max(tm, SUBLANE), SUBLANE), (B // SUBLANE) * SUBLANE)
    grid = pl.cdiv(B, tm_eff)
    if grid % 2 == 1:
        # Re-split into an even number of steps so dimension_semantics=
        # ("parallel",) balances v7x's two TensorCores (no effect on v5e/v6e).
        tm_eff = _round_up(pl.cdiv(B, grid + 1), SUBLANE)
        grid = pl.cdiv(B, tm_eff)
    return tm_eff, grid


def ddqn_forward(x, prepared_params, *, tm=2048, vmem_limit_bytes=None):
    """Fused MLP forward.

    x: (B, input_dim) float32 (unpadded, no batch padding required)
    prepared_params: output of prepare_params
    tm: max batch tile size (rows per grid step)
    """
    p = prepared_params
    B, din = x.shape
    assert p["w1"].shape[0] == din, "input_dim mismatch with prepared params"
    out_dim = p["w3"].shape[1]

    tm_eff, grid = _choose_tiling(B, tm)

    # Weights/biases: full-array blocks, index_map -> (0, 0): VMEM-resident,
    # DMA'd exactly once. x / out: tiled over the batch and pipelined.
    def resident(a):
        return pl.BlockSpec(a.shape, lambda i: (0, 0))

    # TODO(synk): if tm is pushed past ~4K rows or num_dense is scaled up,
    # set vmem_limit_bytes explicitly (v7x scoped default is 32 MiB / 64 MiB
    # physical) — double-buffered x/out tiles and the (tm, hidden) f32
    # temporaries grow linearly with tm.
    return pl.pallas_call(
        mlp_kernel,
        out_shape=jax.ShapeDtypeStruct((B, out_dim), jnp.float32),
        grid=(grid,),
        in_specs=[
            pl.BlockSpec((tm_eff, din), lambda i: (i, 0)),     # x: batch-tiled
            resident(p["w1"]), resident(p["b1"]),
            resident(p["w2"]), resident(p["b2"]),
            resident(p["w3"]), resident(p["b3"]),
        ],
        out_specs=pl.BlockSpec((tm_eff, out_dim), lambda i: (i, 0)),
        compiler_params=pltpu.CompilerParams(
            dimension_semantics=("parallel",),   # shard batch across TCs (v7x)
            vmem_limit_bytes=vmem_limit_bytes,
        ),
    )(x, p["w1"], p["b1"], p["w2"], p["b2"], p["w3"], p["b3"])


def _reference(x, params, weights_dtype=jnp.bfloat16):
    # Same bf16-rounded weights as the kernel, f32 math everywhere else.
    def w(a):
        return a.astype(weights_dtype).astype(jnp.float32)
    h1 = jnp.maximum(x @ w(params["w1"]) + params["b1"], 0.0)
    h2 = jnp.maximum(h1 @ w(params["w2"]) + params["b2"], 0.0)
    return h2 @ w(params["w3"]) + params["b3"]


if __name__ == "__main__":
    input_dim, output_dim, num_dense = 16, 4, 32
    batch = 8

    key = jax.random.PRNGKey(0)
    kx, kp, kx2 = jax.random.split(key, 3)
    x = jax.random.normal(kx, (batch, input_dim), jnp.float32)
    params = init_params(kp, input_dim, output_dim, num_dense)
    prepared = prepare_params(params)   # bf16 weights, hidden padded to 128

    # Small-batch check (single tile, block dims == full array dims).
    out = jax.block_until_ready(ddqn_forward(x, prepared))
    ref = _reference(x, params)
    assert out.shape == (batch, output_dim)
    assert jnp.allclose(out, ref, atol=1e-4, rtol=1e-4)

    # Larger, non-divisible batch: exercises the pipelined batch grid, partial
    # boundary blocks (no batch padding) and the even-grid split for v7x
    # (tm=256 -> 6 steps of 176 rows, last step 160 valid rows).
    big_batch = 1040
    xb = jax.random.normal(kx2, (big_batch, input_dim), jnp.float32)
    out_b = jax.block_until_ready(ddqn_forward(xb, prepared, tm=256))
    ref_b = _reference(xb, params)
    assert out_b.shape == (big_batch, output_dim)
    assert jnp.allclose(out_b, ref_b, atol=1e-4, rtol=1e-4)

    # Default tm=2048 path on the same batch (grid split 2x for megacore).
    out_c = jax.block_until_ready(ddqn_forward(xb, prepared))
    assert jnp.allclose(out_c, ref_b, atol=1e-4, rtol=1e-4)

    print("KERNEL_OK")
</pallas_src>

<mosaic_0001>
module attributes {stable_mosaic.version = 11 : i64} {
  func.func @mlp_kernel(%arg0: i32, %arg1: memref<8x16xf32, #tpu.memory_space<vmem>>, %arg2: memref<16x128xbf16, #tpu.memory_space<vmem>>, %arg3: memref<1x128xf32, #tpu.memory_space<vmem>>, %arg4: memref<128x128xbf16, #tpu.memory_space<vmem>>, %arg5: memref<1x128xf32, #tpu.memory_space<vmem>>, %arg6: memref<128x4xbf16, #tpu.memory_space<vmem>>, %arg7: memref<1x4xf32, #tpu.memory_space<vmem>>, %arg8: memref<8x4xf32, #tpu.memory_space<vmem>>) attributes {dimension_semantics = [#tpu.dimension_semantics<parallel>], iteration_bounds = array<i64: 1>, scalar_prefetch = 0 : i64, scratch_operands = 0 : i64, tpu.core_type = #tpu.core_type<tc>, window_params = [{transform_indices = @transform_0, window_bounds = array<i64: 8, 16>}, {pipeline_mode = #tpu.pipeline_mode<synchronous>, transform_indices = @transform_1, window_bounds = array<i64: 16, 128>}, {pipeline_mode = #tpu.pipeline_mode<synchronous>, transform_indices = @transform_2, window_bounds = array<i64: 1, 128>}, {pipeline_mode = #tpu.pipeline_mode<synchronous>, transform_indices = @transform_3, window_bounds = array<i64: 128, 128>}, {pipeline_mode = #tpu.pipeline_mode<synchronous>, transform_indices = @transform_4, window_bounds = array<i64: 1, 128>}, {pipeline_mode = #tpu.pipeline_mode<synchronous>, transform_indices = @transform_5, window_bounds = array<i64: 128, 4>}, {pipeline_mode = #tpu.pipeline_mode<synchronous>, transform_indices = @transform_6, window_bounds = array<i64: 1, 4>}, {transform_indices = @transform_7, window_bounds = array<i64: 8, 4>}]} {
    %c0 = arith.constant 0 : index
    %c0_0 = arith.constant 0 : index
    %0 = vector.load %arg1[%c0, %c0_0] : memref<8x16xf32, #tpu.memory_space<vmem>>, vector<8x16xf32>
    %c0_1 = arith.constant 0 : index
    %c0_2 = arith.constant 0 : index
    %1 = vector.load %arg2[%c0_1, %c0_2] : memref<16x128xbf16, #tpu.memory_space<vmem>>, vector<16x128xbf16>
    %cst = arith.constant dense<0.000000e+00> : vector<8x128xf32>
    %2 = tpu.matmul %0, %1, %cst {dimension_numbers = #tpu.dot_dimension_numbers<[1], [0], [0], [1], [0, 0, 1, 1], [], []>} : vector<8x16xf32>, vector<16x128xbf16>, vector<8x128xf32> -> vector<8x128xf32>
    %c0_3 = arith.constant 0 : index
    %c0_4 = arith.constant 0 : index
    %3 = vector.load %arg3[%c0_3, %c0_4] : memref<1x128xf32, #tpu.memory_space<vmem>>, vector<1x128xf32>
    %4 = vector.broadcast %3 : vector<1x128xf32> to vector<8x128xf32>
    %5 = arith.addf %2, %4 : vector<8x128xf32>
    %cst_5 = arith.constant 0.000000e+00 : f32
    %6 = vector.broadcast %cst_5 : f32 to vector<8x128xf32>
    %7 = arith.maximumf %5, %6 : vector<8x128xf32>
    %c0_6 = arith.constant 0 : index
    %c0_7 = arith.constant 0 : index
    %8 = vector.load %arg4[%c0_6, %c0_7] : memref<128x128xbf16, #tpu.memory_space<vmem>>, vector<128x128xbf16>
    %cst_8 = arith.constant dense<0.000000e+00> : vector<8x128xf32>
    %9 = tpu.matmul %7, %8, %cst_8 {dimension_numbers = #tpu.dot_dimension_numbers<[1], [0], [0], [1], [0, 0, 1, 1], [], []>} : vector<8x128xf32>, vector<128x128xbf16>, vector<8x128xf32> -> vector<8x128xf32>
    %c0_9 = arith.constant 0 : index
    %c0_10 = arith.constant 0 : index
    %10 = vector.load %arg5[%c0_9, %c0_10] : memref<1x128xf32, #tpu.memory_space<vmem>>, vector<1x128xf32>
    %11 = vector.broadcast %10 : vector<1x128xf32> to vector<8x128xf32>
    %12 = arith.addf %9, %11 : vector<8x128xf32>
    %cst_11 = arith.constant 0.000000e+00 : f32
    %13 = vector.broadcast %cst_11 : f32 to vector<8x128xf32>
    %14 = arith.maximumf %12, %13 : vector<8x128xf32>
    %c0_12 = arith.constant 0 : index
    %c0_13 = arith.constant 0 : index
    %15 = vector.load %arg6[%c0_12, %c0_13] : memref<128x4xbf16, #tpu.memory_space<vmem>>, vector<128x4xbf16>
    %cst_14 = arith.constant dense<0.000000e+00> : vector<8x4xf32>
    %16 = tpu.matmul %14, %15, %cst_14 {dimension_numbers = #tpu.dot_dimension_numbers<[1], [0], [0], [1], [0, 0, 1, 1], [], []>} : vector<8x128xf32>, vector<128x4xbf16>, vector<8x4xf32> -> vector<8x4xf32>
    %c0_15 = arith.constant 0 : index
    %c0_16 = arith.constant 0 : index
    %17 = vector.load %arg7[%c0_15, %c0_16] : memref<1x4xf32, #tpu.memory_space<vmem>>, vector<1x4xf32>
    %18 = vector.broadcast %17 : vector<1x4xf32> to vector<8x4xf32>
    %19 = arith.addf %16, %18 : vector<8x4xf32>
    %c0_17 = arith.constant 0 : index
    %c0_18 = arith.constant 0 : index
    %20 = vector.load %arg8[%c0_17, %c0_18] : memref<8x4xf32, #tpu.memory_space<vmem>>, vector<8x4xf32>
    tpu.vector_store %arg8[%c0_17, %c0_18], %19 {strides = array<i32>} : memref<8x4xf32, #tpu.memory_space<vmem>>, vector<8x4xf32>,
    return
  }
  func.func @transform_0(%arg0: i32) -> (i32, i32) {
    %c0_i32 = arith.constant 0 : i32
    %c0_i32_0 = arith.constant 0 : i32
    return %arg0, %c0_i32 : i32, i32
  }
  func.func @transform_1(%arg0: i32) -> (i32, i32) {
    %c0_i32 = arith.constant 0 : i32
    %c0_i32_0 = arith.constant 0 : i32
    %c0_i32_1 = arith.constant 0 : i32
    return %c0_i32, %c0_i32_0 : i32, i32
  }
  func.func @transform_2(%arg0: i32) -> (i32, i32) {
    %c0_i32 = arith.constant 0 : i32
    %c0_i32_0 = arith.constant 0 : i32
    %c0_i32_1 = arith.constant 0 : i32
    return %c0_i32, %c0_i32_0 : i32, i32
  }
  func.func @transform_3(%arg0: i32) -> (i32, i32) {
    %c0_i32 = arith.constant 0 : i32
    %c0_i32_0 = arith.constant 0 : i32
    %c0_i32_1 = arith.constant 0 : i32
    return %c0_i32, %c0_i32_0 : i32, i32
  }
  func.func @transform_4(%arg0: i32) -> (i32, i32) {
    %c0_i32 = arith.constant 0 : i32
    %c0_i32_0 = arith.constant 0 : i32
    %c0_i32_1 = arith.constant 0 : i32
    return %c0_i32, %c0_i32_0 : i32, i32
  }
  func.func @transform_5(%arg0: i32) -> (i32, i32) {
    %c0_i32 = arith.constant 0 : i32
    %c0_i32_0 = arith.constant 0 : i32
    %c0_i32_1 = arith.constant 0 : i32
    return %c0_i32, %c0_i32_0 : i32, i32
  }
  func.func @transform_6(%arg0: i32) -> (i32, i32) {
    %c0_i32 = arith.constant 0 : i32
    %c0_i32_0 = arith.constant 0 : i32
    %c0_i32_1 = arith.constant 0 : i32
    return %c0_i32, %c0_i32_0 : i32, i32
  }
  func.func @transform_7(%arg0: i32) -> (i32, i32) {
    %c0_i32 = arith.constant 0 : i32
    %c0_i32_0 = arith.constant 0 : i32
    return %arg0, %c0_i32 : i32, i32
  }
}

</mosaic_0001>

<llo_original>
// kernel: tpu_custom_call.1
$region0: #{tpu_custom_call.1}
  #allocation0 [shape = 'u32[]', space=smem, size = 0x4, offset = 0x4, fixed_abs, tag = 'smem constant byte address 0x4 - core index']
  #allocation1 [shape = 'u32[144,128]{1,0:T(1,128)}', space=vmem, size = 0x12000, scoped, tag = 'internal scratch']
  %s0 = inlined_call_operand.vmem [shape: f32[8,16], index: 0, kind: input, shape index: {}]
  %s1 = inlined_call_operand.hbm [shape: bf16[16,128], index: 1, kind: input, shape index: {}]
  %s2 = inlined_call_operand.vmem [shape: f32[1,128], index: 2, kind: input, shape index: {}]
  %s3 = inlined_call_operand.vmem [shape: bf16[128,128], index: 3, kind: input, shape index: {}]
  %s4 = inlined_call_operand.vmem [shape: f32[1,128], index: 4, kind: input, shape index: {}]
  %s5 = inlined_call_operand.vmem [shape: bf16[128,4], index: 5, kind: input, shape index: {}]
  %s6 = inlined_call_operand.vmem [shape: f32[1,4], index: 6, kind: input, shape index: {}]
  %s7 = inlined_call_operand.vmem [shape: f32[8,4], index: 7, kind: output, shape index: {}]
  %s8 = sld [smem:[#allocation0]]
  $region42: #{tpu_custom_call.1} parent=0
    _
  %s10 = ssub.s32 1, %s8
  %s11 = scalar_select 0, %s10, %s8
  $region1: #{tpu_custom_call.1} parent=0
    #allocation2 [shape = 'u8[4096]{0}', space=vmem, size = 0x1000, scoped, tag = 'input window, operand 1, single buffered']
    #allocation3 [shape = 's32[1]{0}', space=sflag, size = 0x4, scoped, tag = 'scoped memory for tpu_custom_call.1']
    %12 = vsyncpa [#allocation3], 0
    // Predicated region
    $region2: #{tpu_custom_call.1} parent=1 // pred_check
      _
    $region3: #{tpu_custom_call.1} parent=1 // pred_check_branch
      %14 = sbr.rel (0) target = $region5
    $region4: #{tpu_custom_call.1} parent=1 // pred_region
      _
    $region5: #{tpu_custom_call.1} parent=1 // pred_fallthru
      _
    // Predicated region
    $region6: #{tpu_custom_call.1} parent=1 // pred_check
      _
    $region7: #{tpu_custom_call.1} parent=1 // pred_check_branch
      %16 = sbr.rel (0) target = $region9
    $region8: #{tpu_custom_call.1} parent=1 // pred_region
      %s18 = ssub.s32 128, 128
      %19 = vsyncadd [#allocation3], %s18
      %s20 = sshll.u32 [#allocation2], 4
      %s21 = int_to_ptr.vmem [resolvable:$true] %s20
      %26 = dma.hbm_to_vmem [thread:$0]  %s1, 128, %s21, [#allocation3], 64, 64, 4
    $region9: #{tpu_custom_call.1} parent=1 // pred_fallthru
      _
    // Predicated region
    $region10: #{tpu_custom_call.1} parent=1 // pred_check
      _
    $region11: #{tpu_custom_call.1} parent=1 // pred_check_branch
      %28 = sbr.rel (0) target = $region13
    $region12: #{tpu_custom_call.1} parent=1 // pred_region
      _
    $region13: #{tpu_custom_call.1} parent=1 // pred_fallthru
      _
    // Predicated region
    $region14: #{tpu_custom_call.1} parent=1 // pred_check
      _
    $region15: #{tpu_custom_call.1} parent=1 // pred_check_branch
      %30 = sbr.rel (0) target = $region17
    $region16: #{tpu_custom_call.1} parent=1 // pred_region
      _
    $region17: #{tpu_custom_call.1} parent=1 // pred_fallthru
      _
    // Predicated region
    $region18: #{tpu_custom_call.1} parent=1 // pred_check
      _
    $region19: #{tpu_custom_call.1} parent=1 // pred_check_branch
      %32 = sbr.rel (0) target = $region21
    $region20: #{tpu_custom_call.1} parent=1 // pred_region
      _
    $region21: #{tpu_custom_call.1} parent=1 // pred_fallthru
      _
    // Predicated region
    $region22: #{tpu_custom_call.1} parent=1 // pred_check
      _
    $region23: #{tpu_custom_call.1} parent=1 // pred_check_branch
      %34 = sbr.rel (0) target = $region25
    $region24: #{tpu_custom_call.1} parent=1 // pred_region
      _
    $region25: #{tpu_custom_call.1} parent=1 // pred_fallthru
      _
    // Predicated region
    $region26: #{tpu_custom_call.1} parent=1 // pred_check
      _
    $region27: #{tpu_custom_call.1} parent=1 // pred_check_branch
      %36 = sbr.rel (0) target = $region29
    $region28: #{tpu_custom_call.1} parent=1 // pred_region
      _
    $region29: #{tpu_custom_call.1} parent=1 // pred_fallthru
      _
    // Predicated region
    $region30: #{tpu_custom_call.1} parent=1 // pred_check
      _
    $region31: #{tpu_custom_call.1} parent=1 // pred_check_branch
      %38 = sbr.rel (0) target = $region33
    $region32: #{tpu_custom_call.1} parent=1 // pred_region
      %39 = dma.done [#allocation3], 128
    $region33: #{tpu_custom_call.1} parent=1 // pred_fallthru
      _
    %v41 = vld [vmem:[%s0] sm:$0xff]
    %v42 = vld [vmem:[#allocation2] sm:$0xf]
    %v43 = vld [vmem:[#allocation2 + $0x4] sm:$0xf]
    %v44 = vld [vmem:[%s2] sm:$0x1]
    %v46 = vlaneseq
    %v47 = vshrl.u32 %v46, 7
    %v48 = vsub.s32 0, %v47
    %v49 = vrot.slane %v44, %v48
    %v53 = vunpack.c.l.b16 %v42
    %v54 = vunpack.c.l.b16 %v43
    %v55 = vpack.c.b16 %v54, %v53
    %vm57 = vcmask 130048
    %v59 = vsel %vm57, %v41, 0
    %61 = vmatprep.subr.bf16.mxu0 0
    %62 = vmatpush1.bf16.msra.mxu0 %v55
    %63 = vmatprep.subr.bf16.mxu0 0
    %64 = vmatpush1.bf16.msra.mxu0 0
    %65 = vmatprep.subr.bf16.mxu0 0
    %66 = vmatpush1.bf16.msra.mxu0 0
    %67 = vmatprep.subr.bf16.mxu0 0
    %68 = vmatpush1.bf16.msra.mxu0 0
    %69 = vmatprep.subr.bf16.mxu0 0
    %70 = vmatpush1.bf16.msra.mxu0 0
    %71 = vmatprep.subr.bf16.mxu0 0
    %72 = vmatpush1.bf16.msra.mxu0 0
    %73 = vmatprep.subr.bf16.mxu0 0
    %74 = vmatpush1.bf16.msra.mxu0 0
    %75 = vmatprep.subr.bf16.mxu0 0
    %76 = vmatpush1.bf16.msra.mxu0 0
    %77 = vmatprep.subr.bf16.mxu0 0
    %78 = vmatpush1.bf16.msra.mxu0 0
    %79 = vmatprep.subr.bf16.mxu0 0
    %80 = vmatpush1.bf16.msra.mxu0 0
    %81 = vmatprep.subr.bf16.mxu0 0
    %82 = vmatpush1.bf16.msra.mxu0 0
    %83 = vmatprep.subr.bf16.mxu0 0
    %84 = vmatpush1.bf16.msra.mxu0 0
    %85 = vmatprep.subr.bf16.mxu0 0
    %86 = vmatpush1.bf16.msra.mxu0 0
    %87 = vmatprep.subr.bf16.mxu0 0
    %88 = vmatpush1.bf16.msra.mxu0 0
    %89 = vmatprep.subr.bf16.mxu0 0
    %90 = vmatpush1.bf16.msra.mxu0 0
    %91 = vmatprep.subr.bf16.mxu0 0
    %92 = vmatpush1.bf16.msra.mxu0 0
    %93 = vmatprep.mubr.f32.mxu0 0.0
    %94 = vmatmul.mubr.f32.gmra.mrb[0].mxu0 %v59
    %v95 = vpop.f32.mrb[0].mxu0
    %v96 = vadd.f32 %v49, %v95
    %v97 = vpop.f32.mrb[0].mxu0
    %98 = vdwg.mxu0
    %v99 = vmax.f32 %v96, 0.0
    %v100 = vld [vmem:[%s3] sm:$0xf]
    %v101 = vld [vmem:[%s3 + $0x4] sm:$0xf]
    %v102 = vld [vmem:[%s3 + $0x8] sm:$0xf]
    %v103 = vld [vmem:[%s3 + $0xc] sm:$0xf]
    %v104 = vld [vmem:[%s3 + $0x10] sm:$0xf]
    %v105 = vld [vmem:[%s3 + $0x14] sm:$0xf]
    %v106 = vld [vmem:[%s3 + $0x18] sm:$0xf]
    %v107 = vld [vmem:[%s3 + $0x1c] sm:$0xf]
    %v108 = vld [vmem:[%s3 + $0x20] sm:$0xf]
    %v109 = vld [vmem:[%s3 + $0x24] sm:$0xf]
    %v110 = vld [vmem:[%s3 + $0x28] sm:$0xf]
    %v111 = vld [vmem:[%s3 + $0x2c] sm:$0xf]
    %v112 = vld [vmem:[%s3 + $0x30] sm:$0xf]
    %v113 = vld [vmem:[%s3 + $0x34] sm:$0xf]
    %v114 = vld [vmem:[%s3 + $0x38] sm:$0xf]
    %v115 = vld [vmem:[%s3 + $0x3c] sm:$0xf]
    %v116 = vld [vmem:[%s4] sm:$0x1]
    %v118 = vlaneseq
    %v119 = vshrl.u32 %v118, 7
    %v120 = vsub.s32 0, %v119
    %v121 = vrot.slane %v116, %v120
    %v139 = vunpack.c.l.b16 %v100
    %v140 = vunpack.c.l.b16 %v101
    %v141 = vunpack.c.l.b16 %v102
    %v142 = vunpack.c.l.b16 %v103
    %v143 = vunpack.c.l.b16 %v104
    %v144 = vunpack.c.l.b16 %v105
    %v145 = vunpack.c.l.b16 %v106
    %v146 = vunpack.c.l.b16 %v107
    %v147 = vunpack.c.l.b16 %v108
    %v148 = vunpack.c.l.b16 %v109
    %v149 = vunpack.c.l.b16 %v110
    %v150 = vunpack.c.l.b16 %v111
    %v151 = vunpack.c.l.b16 %v112
    %v152 = vunpack.c.l.b16 %v113
    %v153 = vunpack.c.l.b16 %v114
    %v154 = vunpack.c.l.b16 %v115
    %v155 = vpack.c.b16 %v140, %v139
    %v156 = vpack.c.b16 %v142, %v141
    %v157 = vpack.c.b16 %v144, %v143
    %v158 = vpack.c.b16 %v146, %v145
    %v159 = vpack.c.b16 %v148, %v147
    %v160 = vpack.c.b16 %v150, %v149
    %v161 = vpack.c.b16 %v152, %v151
    %v162 = vpack.c.b16 %v154, %v153
    %171 = vmatprep.subr.bf16.mxu0 0
    %172 = vmatpush1.bf16.msra.mxu0 %v155
    %173 = vmatprep.subr.bf16.mxu0 0
    %174 = vmatpush1.bf16.msra.mxu0 %v156
    %175 = vmatprep.subr.bf16.mxu0 0
    %176 = vmatpush1.bf16.msra.mxu0 %v157
    %177 = vmatprep.subr.bf16.mxu0 0
    %178 = vmatpush1.bf16.msra.mxu0 %v158
    %179 = vmatprep.subr.bf16.mxu0 0
    %180 = vmatpush1.bf16.msra.mxu0 %v159
    %181 = vmatprep.subr.bf16.mxu0 0
    %182 = vmatpush1.bf16.msra.mxu0 %v160
    %183 = vmatprep.subr.bf16.mxu0 0
    %184 = vmatpush1.bf16.msra.mxu0 %v161
    %185 = vmatprep.subr.bf16.mxu0 0
    %186 = vmatpush1.bf16.msra.mxu0 %v162
    %187 = vmatprep.subr.bf16.mxu0 0
    %188 = vmatpush1.bf16.msra.mxu0 0
    %189 = vmatprep.subr.bf16.mxu0 0
    %190 = vmatpush1.bf16.msra.mxu0 0
    %191 = vmatprep.subr.bf16.mxu0 0
    %192 = vmatpush1.bf16.msra.mxu0 0
    %193 = vmatprep.subr.bf16.mxu0 0
    %194 = vmatpush1.bf16.msra.mxu0 0
    %195 = vmatprep.subr.bf16.mxu0 0
    %196 = vmatpush1.bf16.msra.mxu0 0
    %197 = vmatprep.subr.bf16.mxu0 0
    %198 = vmatpush1.bf16.msra.mxu0 0
    %199 = vmatprep.subr.bf16.mxu0 0
    %200 = vmatpush1.bf16.msra.mxu0 0
    %201 = vmatprep.subr.bf16.mxu0 0
    %202 = vmatpush1.bf16.msra.mxu0 0
    %203 = vmatprep.mubr.f32.mxu0 0.0
    %204 = vmatmul.mubr.f32.gmra.mrb[0].mxu0 %v99
    %v205 = vpop.f32.mrb[0].mxu0
    %v206 = vadd.f32 %v121, %v205
    %v207 = vpop.f32.mrb[0].mxu0
    %208 = vdwg.mxu0
    %v209 = vmax.f32 %v206, 0.0
    %v210 = vld [vmem:[%s5] sm:$0xf]
    %v211 = vld [vmem:[%s5 + $0x4] sm:$0xf]
    %v212 = vld [vmem:[%s5 + $0x8] sm:$0xf]
    %v213 = vld [vmem:[%s5 + $0xc] sm:$0xf]
    %v214 = vld [vmem:[%s5 + $0x10] sm:$0xf]
    %v215 = vld [vmem:[%s5 + $0x14] sm:$0xf]
    %v216 = vld [vmem:[%s5 + $0x18] sm:$0xf]
    %v217 = vld [vmem:[%s5 + $0x1c] sm:$0xf]
    %v218 = vld [vmem:[%s5 + $0x20] sm:$0xf]
    %v219 = vld [vmem:[%s5 + $0x24] sm:$0xf]
    %v220 = vld [vmem:[%s5 + $0x28] sm:$0xf]
    %v221 = vld [vmem:[%s5 + $0x2c] sm:$0xf]
    %v222 = vld [vmem:[%s5 + $0x30] sm:$0xf]
    %v223 = vld [vmem:[%s5 + $0x34] sm:$0xf]
    %v224 = vld [vmem:[%s5 + $0x38] sm:$0xf]
    %v225 = vld [vmem:[%s5 + $0x3c] sm:$0xf]
    %v226 = vld [vmem:[%s6] sm:$0x1]
    %v228 = vlaneseq
    %v229 = vshrl.u32 %v228, 7
    %v230 = vsub.s32 0, %v229
    %v231 = vrot.slane %v226, %v230
    %v249 = vunpack.c.l.b16 %v210
    %v250 = vunpack.c.l.b16 %v211
    %v251 = vunpack.c.l.b16 %v212
    %v252 = vunpack.c.l.b16 %v213
    %v253 = vunpack.c.l.b16 %v214
    %v254 = vunpack.c.l.b16 %v215
    %v255 = vunpack.c.l.b16 %v216
    %v256 = vunpack.c.l.b16 %v217
    %v257 = vunpack.c.l.b16 %v218
    %v258 = vunpack.c.l.b16 %v219
    %v259 = vunpack.c.l.b16 %v220
    %v260 = vunpack.c.l.b16 %v221
    %v261 = vunpack.c.l.b16 %v222
    %v262 = vunpack.c.l.b16 %v223
    %v263 = vunpack.c.l.b16 %v224
    %v264 = vunpack.c.l.b16 %v225
    %v265 = vpack.c.b16 %v250, %v249
    %v266 = vpack.c.b16 %v252, %v251
    %v267 = vpack.c.b16 %v254, %v253
    %v268 = vpack.c.b16 %v256, %v255
    %v269 = vpack.c.b16 %v258, %v257
    %v270 = vpack.c.b16 %v260, %v259
    %v271 = vpack.c.b16 %v262, %v261
    %v272 = vpack.c.b16 %v264, %v263
    %281 = vmatprep.subr.bf16.mxu0 0
    %282 = vmatpush1.bf16.msra.mxu0 %v265
    %283 = vmatprep.subr.bf16.mxu0 0
    %284 = vmatpush1.bf16.msra.mxu0 %v266
    %285 = vmatprep.subr.bf16.mxu0 0
    %286 = vmatpush1.bf16.msra.mxu0 %v267
    %287 = vmatprep.subr.bf16.mxu0 0
    %288 = vmatpush1.bf16.msra.mxu0 %v268
    %289 = vmatprep.subr.bf16.mxu0 0
    %290 = vmatpush1.bf16.msra.mxu0 %v269
    %291 = vmatprep.subr.bf16.mxu0 0
    %292 = vmatpush1.bf16.msra.mxu0 %v270
    %293 = vmatprep.subr.bf16.mxu0 0
    %294 = vmatpush1.bf16.msra.mxu0 %v271
    %295 = vmatprep.subr.bf16.mxu0 0
    %296 = vmatpush1.bf16.msra.mxu0 %v272
    %297 = vmatprep.subr.bf16.mxu0 0
    %298 = vmatpush1.bf16.msra.mxu0 0
    %299 = vmatprep.subr.bf16.mxu0 0
    %300 = vmatpush1.bf16.msra.mxu0 0
    %301 = vmatprep.subr.bf16.mxu0 0
    %302 = vmatpush1.bf16.msra.mxu0 0
    %303 = vmatprep.subr.bf16.mxu0 0
    %304 = vmatpush1.bf16.msra.mxu0 0
    %305 = vmatprep.subr.bf16.mxu0 0
    %306 = vmatpush1.bf16.msra.mxu0 0
    %307 = vmatprep.subr.bf16.mxu0 0
    %308 = vmatpush1.bf16.msra.mxu0 0
    %309 = vmatprep.subr.bf16.mxu0 0
    %310 = vmatpush1.bf16.msra.mxu0 0
    %311 = vmatprep.subr.bf16.mxu0 0
    %312 = vmatpush1.bf16.msra.mxu0 0
    %313 = vmatprep.mubr.f32.mxu0 0.0
    %314 = vmatmul.mubr.f32.gmra.mrb[0].mxu0 %v209
    %v315 = vpop.f32.mrb[0].mxu0
    %v316 = vadd.f32 %v231, %v315
    %v317 = vpop.f32.mrb[0].mxu0
    %318 = vdwg.mxu0
    %vm319 = vcmask 31744
    %320 = vst.msk [vmem:[%s7] sm:$0xff] %vm319, %v316
    // Predicated region
    $region34: #{tpu_custom_call.1} parent=1 // pred_check
      _
    $region35: #{tpu_custom_call.1} parent=1 // pred_check_branch
      %322 = sbr.rel (0) target = $region37
    $region36: #{tpu_custom_call.1} parent=1 // pred_region
      _
    $region37: #{tpu_custom_call.1} parent=1 // pred_fallthru
      _
    // Predicated region
    $region38: #{tpu_custom_call.1} parent=1 // pred_check
      _
    $region39: #{tpu_custom_call.1} parent=1 // pred_check_branch
      %324 = sbr.rel (0) target = $region41
    $region40: #{tpu_custom_call.1} parent=1 // pred_region
      _
    $region41: #{tpu_custom_call.1} parent=1 // pred_fallthru
      _
    %325 = vsyncpa [#allocation3], 1

</llo_original>
